<compile_context>
chip_gen: v5e
topology: v5e:2x2
jax: 0.10.0
libtpu: 0.0.40
codegen_flags: <defaults>
</compile_context>

<pallas_src>
import numpy as np
import jax
import jax.numpy as jnp
from jax.experimental import pallas as pl
from jax.experimental.pallas import tpu as pltpu


def _adaptive_pool_matrix(in_size: int, out_size: int) -> np.ndarray:
    """Exact 1-D linear operator for torch adaptive_avg_pool (out_size rows, in_size cols)."""
    m = np.zeros((out_size, in_size), dtype=np.float32)
    for i in range(out_size):
        start = (i * in_size) // out_size
        end = -(-((i + 1) * in_size) // out_size)  # ceil
        m[i, start:end] = 1.0 / (end - start)
    return m


def _ppa_kernel(x_ref, ph_ref, pwt_ref, w_ref, b_ref, o_ref):
    # x_ref  : (1, C, H, W)   one batch element, NCHW
    # ph_ref : (_H, H)        H-pooling operator
    # pwt_ref: (W, _W)        W-pooling operator (transposed)
    # w_ref  : (C, C)         1x1 conv weight (out_ch, in_ch)
    # b_ref  : (C, 1)         conv bias
    # o_ref  : (1, C, _H*_W)
    _, C, H, W = x_ref.shape
    _H = ph_ref.shape[0]
    _W = pwt_ref.shape[1]

    x = x_ref[0]  # (C, H, W)

    # ---- pool along W: one lane-dense 2-D MXU matmul, M = C*H ----
    t = jnp.dot(x.reshape(C * H, W), pwt_ref[...],
                preferred_element_type=jnp.float32)          # (C*H, _W)

    # ---- pool along H: batched matmul over channels ('bqk,bkd->bqd' pattern) ----
    ph_b = jnp.broadcast_to(ph_ref[...][None], (C, _H, H))   # hoisted once per step
    pooled = jnp.einsum('cih,chw->ciw', ph_b, t.reshape(C, H, _W),
                        preferred_element_type=jnp.float32)  # (C, _H, _W)

    # ---- 1x1 conv over channels + bias ----
    out = jnp.dot(w_ref[...], pooled.reshape(C, _H * _W),
                  preferred_element_type=jnp.float32) + b_ref[...]
    o_ref[0] = out.astype(o_ref.dtype)


def pyramid_pool_agg(x_nchw: jax.Array, weight: jax.Array, bias: jax.Array, stride: int) -> jax.Array:
    """Pallas implementation of PyramidPoolAgg.forward.

    x_nchw : (B, C, H, W) float32
    weight : (C, C, 1, 1)  -- nn.Conv2d(dim, dim, 1) weight
    bias   : (C,)
    returns (B, C, H//stride, W//stride)
    """
    B, C, H, W = x_nchw.shape
    _H, _W = H // stride, W // stride

    # Exact separable adaptive-avg-pool operators (tiny).
    ph = jnp.asarray(_adaptive_pool_matrix(H, _H))          # (_H, H)
    pwt = jnp.asarray(_adaptive_pool_matrix(W, _W).T)       # (W, _W)
    w2 = weight[:, :, 0, 0]                                 # (C_out, C_in)
    b2 = bias.reshape(C, 1)

    # Advisory cost for XLA scheduling around the custom call.
    flops = 2 * B * (C * H * W * _W + C * _H * H * _W + C * C * _H * _W)
    bytes_accessed = 4 * (B * C * H * W + B * C * _H * _W
                          + _H * H + W * _W + C * C + C)
    cost = pl.CostEstimate(flops=flops, transcendentals=0,
                           bytes_accessed=bytes_accessed)

    # Per-step VMEM budget: double-buffered in/out blocks + weights + intermediates.
    vmem_bytes = 4 * (2 * C * H * W          # input block, double-buffered
                      + 2 * C * _H * _W      # output block, double-buffered
                      + C * H * _W           # W-pooled intermediate
                      + C * _H * H           # broadcast Ph
                      + C * _H * _W          # pooled intermediate
                      + _H * H + W * _W + C * C + C)
    vmem_limit = int(min(max(2 * vmem_bytes, 32 * 1024 * 1024), 48 * 1024 * 1024))

    out_flat = pl.pallas_call(
        _ppa_kernel,
        out_shape=jax.ShapeDtypeStruct((B, C, _H * _W), x_nchw.dtype),
        grid_spec=pltpu.PrefetchScalarGridSpec(
            num_scalar_prefetch=0,
            grid=(B,),
            in_specs=[
                pl.BlockSpec((1, C, H, W), lambda b: (b, 0, 0, 0)),
                pl.BlockSpec((_H, H), lambda b: (0, 0)),
                pl.BlockSpec((W, _W), lambda b: (0, 0)),
                pl.BlockSpec((C, C), lambda b: (0, 0)),
                pl.BlockSpec((C, 1), lambda b: (0, 0)),
            ],
            out_specs=pl.BlockSpec((1, C, _H * _W), lambda b: (b, 0, 0)),
        ),
        compiler_params=pltpu.CompilerParams(
            dimension_semantics=("parallel",),
            vmem_limit_bytes=vmem_limit,
        ),
        cost_estimate=cost,
    )(x_nchw, ph, pwt, w2, b2)

    # (B, C, _H*_W) -> (B, C, _H, _W): pure metadata reshape (no transpose, no HBM pass).
    return out_flat.reshape(B, C, _H, _W)


def _reference(x_nchw, weight, bias, stride):
    """Pure-JAX reference for correctness checking."""
    B, C, H, W = x_nchw.shape
    _H, _W = H // stride, W // stride
    ph = jnp.asarray(_adaptive_pool_matrix(H, _H))
    pw = jnp.asarray(_adaptive_pool_matrix(W, _W))
    pooled = jnp.einsum("Hh,bchw,Ww->bcHW", ph, x_nchw, pw)
    out = jnp.einsum("oc,bcHW->boHW", weight[:, :, 0, 0], pooled) + bias[None, :, None, None]
    return out


if __name__ == "__main__":
    B, C, H, W = 2, 4, 16, 16
    stride = 2

    key = jax.random.PRNGKey(0)
    kx, kw, kb = jax.random.split(key, 3)
    x = jax.random.normal(kx, (B, C, H, W), dtype=jnp.float32)
    # Deterministic synthetic parameters for nn.Conv2d(dim, dim, kernel_size=1)
    weight = jax.random.normal(kw, (C, C, 1, 1), dtype=jnp.float32) * 0.1
    bias = jax.random.normal(kb, (C,), dtype=jnp.float32) * 0.1

    out = pyramid_pool_agg(x, weight, bias, stride)
    out = jax.block_until_ready(out)

    ref = _reference(x, weight, bias, stride)
    assert out.shape == (B, C, H // stride, W // stride), out.shape
    assert jnp.allclose(out, ref, atol=1e-5, rtol=1e-5), "mismatch vs reference"

    print("KERNEL_OK")
</pallas_src>

<mosaic_0001>
module attributes {stable_mosaic.version = 11 : i64} {
  func.func @_ppa_kernel(%arg0: i32, %arg1: memref<1x4x16x16xf32, #tpu.memory_space<vmem>>, %arg2: memref<8x16xf32, #tpu.memory_space<vmem>>, %arg3: memref<16x8xf32, #tpu.memory_space<vmem>>, %arg4: memref<4x4xf32, #tpu.memory_space<vmem>>, %arg5: memref<4x1xf32, #tpu.memory_space<vmem>>, %arg6: memref<1x4x64xf32, #tpu.memory_space<vmem>>) attributes {dimension_semantics = [#tpu.dimension_semantics<parallel>], iteration_bounds = array<i64: 2>, scalar_prefetch = 0 : i64, scratch_operands = 0 : i64, tpu.core_type = #tpu.core_type<tc>, window_params = [{transform_indices = @transform_0, window_bounds = array<i64: 1, 4, 16, 16>}, {pipeline_mode = #tpu.pipeline_mode<synchronous>, transform_indices = @transform_1, window_bounds = array<i64: 8, 16>}, {pipeline_mode = #tpu.pipeline_mode<synchronous>, transform_indices = @transform_2, window_bounds = array<i64: 16, 8>}, {pipeline_mode = #tpu.pipeline_mode<synchronous>, transform_indices = @transform_3, window_bounds = array<i64: 4, 4>}, {pipeline_mode = #tpu.pipeline_mode<synchronous>, transform_indices = @transform_4, window_bounds = array<i64: 4, 1>}, {transform_indices = @transform_5, window_bounds = array<i64: 1, 4, 64>}]} {
    %c0 = arith.constant 0 : index
    %c0_0 = arith.constant 0 : index
    %c0_1 = arith.constant 0 : index
    %c0_2 = arith.constant 0 : index
    %0 = vector.load %arg1[%c0, %c0_0, %c0_1, %c0_2] : memref<1x4x16x16xf32, #tpu.memory_space<vmem>>, vector<1x4x16x16xf32>
    %1 = vector.shape_cast %0 : vector<1x4x16x16xf32> to vector<4x16x16xf32>
    %2 = vector.shape_cast %1 : vector<4x16x16xf32> to vector<64x16xf32>
    %c0_3 = arith.constant 0 : index
    %c0_4 = arith.constant 0 : index
    %3 = vector.load %arg3[%c0_3, %c0_4] : memref<16x8xf32, #tpu.memory_space<vmem>>, vector<16x8xf32>
    %cst = arith.constant dense<0.000000e+00> : vector<64x8xf32>
    %4 = tpu.matmul %2, %3, %cst {dimension_numbers = #tpu.dot_dimension_numbers<[1], [0], [0], [1], [0, 0, 1, 1], [], []>} : vector<64x16xf32>, vector<16x8xf32>, vector<64x8xf32> -> vector<64x8xf32>
    %c0_5 = arith.constant 0 : index
    %c0_6 = arith.constant 0 : index
    %5 = vector.load %arg2[%c0_5, %c0_6] : memref<8x16xf32, #tpu.memory_space<vmem>>, vector<8x16xf32>
    %6 = vector.shape_cast %5 : vector<8x16xf32> to vector<1x8x16xf32>
    %7 = vector.shape_cast %6 : vector<1x8x16xf32> to vector<1x8x16xf32>
    %8 = vector.broadcast %7 : vector<1x8x16xf32> to vector<4x8x16xf32>
    %9 = vector.shape_cast %4 : vector<64x8xf32> to vector<4x16x8xf32>
    "tpu.trace_start"() <{level = 10 : i32, message = "cih,chw->ciw"}> : () -> ()
    %cst_7 = arith.constant dense<0.000000e+00> : vector<4x8x8xf32>
    %10 = tpu.matmul %8, %9, %cst_7 {dimension_numbers = #tpu.dot_dimension_numbers<[2], [1], [1], [2], [0, 0, 0, 1, 1, 2], [0], [0]>} : vector<4x8x16xf32>, vector<4x16x8xf32>, vector<4x8x8xf32> -> vector<4x8x8xf32>
    "tpu.trace_stop"() : () -> ()
    %c0_8 = arith.constant 0 : index
    %c0_9 = arith.constant 0 : index
    %11 = vector.load %arg4[%c0_8, %c0_9] : memref<4x4xf32, #tpu.memory_space<vmem>>, vector<4x4xf32>
    %12 = vector.shape_cast %10 : vector<4x8x8xf32> to vector<4x64xf32>
    %cst_10 = arith.constant dense<0.000000e+00> : vector<4x64xf32>
    %13 = tpu.matmul %11, %12, %cst_10 {dimension_numbers = #tpu.dot_dimension_numbers<[1], [0], [0], [1], [0, 0, 1, 1], [], []>} : vector<4x4xf32>, vector<4x64xf32>, vector<4x64xf32> -> vector<4x64xf32>
    %c0_11 = arith.constant 0 : index
    %c0_12 = arith.constant 0 : index
    %14 = vector.load %arg5[%c0_11, %c0_12] : memref<4x1xf32, #tpu.memory_space<vmem>>, vector<4x1xf32>
    %15 = vector.broadcast %14 : vector<4x1xf32> to vector<4x64xf32>
    %16 = arith.addf %13, %15 : vector<4x64xf32>
    %c0_13 = arith.constant 0 : index
    %c0_14 = arith.constant 0 : index
    %c0_15 = arith.constant 0 : index
    %17 = vector.load %arg6[%c0_13, %c0_14, %c0_15] : memref<1x4x64xf32, #tpu.memory_space<vmem>>, vector<1x4x64xf32>
    %18 = vector.shape_cast %17 : vector<1x4x64xf32> to vector<4x64xf32>
    %19 = vector.shape_cast %16 : vector<4x64xf32> to vector<1x4x64xf32>
    tpu.vector_store %arg6[%c0_13, %c0_14, %c0_15], %19 {strides = array<i32>} : memref<1x4x64xf32, #tpu.memory_space<vmem>>, vector<1x4x64xf32>,
    return
  }
  func.func @transform_0(%arg0: i32) -> (i32, i32, i32, i32) {
    %c0_i32 = arith.constant 0 : i32
    %c0_i32_0 = arith.constant 0 : i32
    %c0_i32_1 = arith.constant 0 : i32
    %c0_i32_2 = arith.constant 0 : i32
    return %arg0, %c0_i32, %c0_i32_0, %c0_i32_1 : i32, i32, i32, i32
  }
  func.func @transform_1(%arg0: i32) -> (i32, i32) {
    %c0_i32 = arith.constant 0 : i32
    %c0_i32_0 = arith.constant 0 : i32
    %c0_i32_1 = arith.constant 0 : i32
    return %c0_i32, %c0_i32_0 : i32, i32
  }
  func.func @transform_2(%arg0: i32) -> (i32, i32) {
    %c0_i32 = arith.constant 0 : i32
    %c0_i32_0 = arith.constant 0 : i32
    %c0_i32_1 = arith.constant 0 : i32
    return %c0_i32, %c0_i32_0 : i32, i32
  }
  func.func @transform_3(%arg0: i32) -> (i32, i32) {
    %c0_i32 = arith.constant 0 : i32
    %c0_i32_0 = arith.constant 0 : i32
    %c0_i32_1 = arith.constant 0 : i32
    return %c0_i32, %c0_i32_0 : i32, i32
  }
  func.func @transform_4(%arg0: i32) -> (i32, i32) {
    %c0_i32 = arith.constant 0 : i32
    %c0_i32_0 = arith.constant 0 : i32
    %c0_i32_1 = arith.constant 0 : i32
    return %c0_i32, %c0_i32_0 : i32, i32
  }
  func.func @transform_5(%arg0: i32) -> (i32, i32, i32) {
    %c0_i32 = arith.constant 0 : i32
    %c0_i32_0 = arith.constant 0 : i32
    %c0_i32_1 = arith.constant 0 : i32
    return %arg0, %c0_i32, %c0_i32_0 : i32, i32, i32
  }
}

</mosaic_0001>

<llo_original>
// kernel: tpu_custom_call.1
$region0: #{tpu_custom_call.1}
  #allocation0 [shape = 'u32[]', space=smem, size = 0x4, offset = 0x4, fixed_abs, tag = 'smem constant byte address 0x4 - core index']
  #allocation1 [shape = 'u32[72,128]{1,0:T(1,128)}', space=vmem, size = 0x9000, scoped, tag = 'internal scratch']
  %s0 = inlined_call_operand.hbm [shape: f32[2,4,16,16], index: 0, kind: input, shape index: {}]
  %s1 = inlined_call_operand.vmem [shape: f32[8,16], index: 1, kind: input, shape index: {}]
  %s2 = inlined_call_operand.vmem [shape: f32[16,8], index: 2, kind: input, shape index: {}]
  %s3 = inlined_call_operand.vmem [shape: f32[4,4], index: 3, kind: input, shape index: {}]
  %s4 = inlined_call_operand.vmem [shape: f32[4,1], index: 4, kind: input, shape index: {}]
  %s5 = inlined_call_operand.hbm [shape: f32[2,4,64], index: 5, kind: output, shape index: {}]
  %s6 = sld [smem:[#allocation0]]
  $region57: #{tpu_custom_call.1} parent=0
    _
  %s8 = ssub.s32 1, %s6
  %s9 = scalar_select 0, %s8, %s6
  $region1: #{tpu_custom_call.1} parent=0
    #allocation2 [shape = 'u8[65536]{0}', space=vmem, size = 0x10000, scoped, tag = 'input window, operand 0']
    #allocation3 [shape = 's32[2]{0}', space=sflag, size = 0x8, scoped, tag = 'scoped memory for tpu_custom_call.1']
    #allocation4 [shape = 's32[2]{0}', space=sflag, size = 0x8, scoped, tag = 'scoped memory for tpu_custom_call.1']
    #allocation5 [shape = 'u8[4096]{0}', space=vmem, size = 0x1000, scoped, tag = 'output window, operand 0']
    %10 = vsyncpa [#allocation3], 0
    %s11 = scalar_lea.sflag [#allocation3], 1
    %12 = vsyncpa %s11, 0
    %13 = vsyncpa [#allocation4], 0
    %s14 = scalar_lea.sflag [#allocation4], 1
    %15 = vsyncpa %s14, 0
    loop: start=0, step=1, limit=4
    $region2: #{tpu_custom_call.1} parent=1 // loop_pre_header
      _
    $region3: #{tpu_custom_call.1} parent=1 // loop_header
      %s17 = sphi 0, %s21
      %p18 = scmp.ge.s32.totalorder %s17, 4
      %s27 = sphi 0, %s29
      %s30 = sphi 0, %s27
      %s31 = sphi 0, %s30
      %s47 = sphi 0, %s31
      %s51 = sphi 0, %s51
      %s53 = sphi 0, %s51
      %s54 = sphi 0, %s53
      %s68 = sphi 0, %s54
      %s72 = sphi 0, %s72
      %s74 = sphi 0, %s72
      %s75 = sphi 0, %s74
      %s89 = sphi 0, %s75
      %s93 = sphi 0, %s93
      %s95 = sphi 0, %s93
      %s96 = sphi 0, %s95
      %s110 = sphi 0, %s96
      %s114 = sphi 0, %s114
      %s116 = sphi 0, %s114
      %s117 = sphi 0, %s116
      %s131 = sphi 0, %s117
      %s137 = sphi 0, %s139
      %s140 = sphi 0, %s137
      %s141 = sphi 0, %s140
      %s157 = sphi 0, %s141
    $region4: #{tpu_custom_call.1} parent=1 // loop_header_branch
      %20 = sbr.rel (%p18) target = $region8
    $region5: #{tpu_custom_call.1} parent=1 // loop_body
      %s22 = ssub.s32 %s17, 1
      %s23 = ssub.s32 %s17, 2
      %s24 = sadd.s32 %s17, 1
      %s25 = ssub.s32 %s17, %s24
      %p26 = scmp.eq.s32.totalorder %s25, 0
      %s28 = sadd.s32 %s27, 1
      %s29 = scalar_select %p26, %s27, %s28
      %p32 = pneg %p26
      %p33 = scmp.eq.s32.totalorder %s17, 1
      %p34 = por %p32, %p33
      %p35 = scmp.ne.s32.totalorder %s27, %s30
      %p36 = scmp.eq.s32.totalorder %s17, 0
      %p37 = por %p35, %p36
      %p38 = scmp.ne.s32.totalorder %s27, %s30
      %p39 = scmp.eq.s32.totalorder %s22, 1
      %p40 = por %p38, %p39
      %p41 = scmp.ne.s32.totalorder %s30, %s31
      %p42 = scmp.eq.s32.totalorder %s22, 0
      %p43 = por %p41, %p42
      %p44 = scmp.ne.s32.totalorder %s30, %s31
      %p45 = scmp.eq.s32.totalorder %s23, 1
      %p46 = por %p44, %p45
      %p48 = scmp.ne.s32.totalorder %s31, %s47
      %p49 = scmp.eq.s32.totalorder %s23, 0
      %p50 = por %p48, %p49
      %s52 = sadd.s32 %s51, 1
      %p55 = scmp.eq.s32.totalorder %s17, 1
      %p56 = scmp.ne.s32.totalorder %s51, %s53
      %p57 = scmp.eq.s32.totalorder %s17, 0
      %p58 = por %p56, %p57
      %p59 = scmp.ne.s32.totalorder %s51, %s53
      %p60 = scmp.eq.s32.totalorder %s22, 1
      %p61 = por %p59, %p60
      %p62 = scmp.ne.s32.totalorder %s53, %s54
      %p63 = scmp.eq.s32.totalorder %s22, 0
      %p64 = por %p62, %p63
      %p65 = scmp.ne.s32.totalorder %s53, %s54
      %p66 = scmp.eq.s32.totalorder %s23, 1
      %p67 = por %p65, %p66
      %p69 = scmp.ne.s32.totalorder %s54, %s68
      %p70 = scmp.eq.s32.totalorder %s23, 0
      %p71 = por %p69, %p70
      %s73 = sadd.s32 %s72, 1
      %p76 = scmp.eq.s32.totalorder %s17, 1
      %p77 = scmp.ne.s32.totalorder %s72, %s74
      %p78 = scmp.eq.s32.totalorder %s17, 0
      %p79 = por %p77, %p78
      %p80 = scmp.ne.s32.totalorder %s72, %s74
      %p81 = scmp.eq.s32.totalorder %s22, 1
      %p82 = por %p80, %p81
      %p83 = scmp.ne.s32.totalorder %s74, %s75
      %p84 = scmp.eq.s32.totalorder %s22, 0
      %p85 = por %p83, %p84
      %p86 = scmp.ne.s32.totalorder %s74, %s75
      %p87 = scmp.eq.s32.totalorder %s23, 1
      %p88 = por %p86, %p87
      %p90 = scmp.ne.s32.totalorder %s75, %s89
      %p91 = scmp.eq.s32.totalorder %s23, 0
      %p92 = por %p90, %p91
      %s94 = sadd.s32 %s93, 1
      %p97 = scmp.eq.s32.totalorder %s17, 1
      %p98 = scmp.ne.s32.totalorder %s93, %s95
      %p99 = scmp.eq.s32.totalorder %s17, 0
      %p100 = por %p98, %p99
      %p101 = scmp.ne.s32.totalorder %s93, %s95
      %p102 = scmp.eq.s32.totalorder %s22, 1
      %p103 = por %p101, %p102
      %p104 = scmp.ne.s32.totalorder %s95, %s96
      %p105 = scmp.eq.s32.totalorder %s22, 0
      %p106 = por %p104, %p105
      %p107 = scmp.ne.s32.totalorder %s95, %s96
      %p108 = scmp.eq.s32.totalorder %s23, 1
      %p109 = por %p107, %p108
      %p111 = scmp.ne.s32.totalorder %s96, %s110
      %p112 = scmp.eq.s32.totalorder %s23, 0
      %p113 = por %p111, %p112
      %s115 = sadd.s32 %s114, 1
      %p118 = scmp.eq.s32.totalorder %s17, 1
      %p119 = scmp.ne.s32.totalorder %s114, %s116
      %p120 = scmp.eq.s32.totalorder %s17, 0
      %p121 = por %p119, %p120
      %p122 = scmp.ne.s32.totalorder %s114, %s116
      %p123 = scmp.eq.s32.totalorder %s22, 1
      %p124 = por %p122, %p123
      %p125 = scmp.ne.s32.totalorder %s116, %s117
      %p126 = scmp.eq.s32.totalorder %s22, 0
      %p127 = por %p125, %p126
      %p128 = scmp.ne.s32.totalorder %s116, %s117
      %p129 = scmp.eq.s32.totalorder %s23, 1
      %p130 = por %p128, %p129
      %p132 = scmp.ne.s32.totalorder %s117, %s131
      %p133 = scmp.eq.s32.totalorder %s23, 0
      %p134 = por %p132, %p133
      %s135 = ssub.s32 %s17, %s24
      %p136 = scmp.eq.s32.totalorder %s135, 0
      %s138 = sadd.s32 %s137, 1
      %s139 = scalar_select %p136, %s137, %s138
      %p142 = pneg %p136
      %p143 = scmp.eq.s32.totalorder %s17, 1
      %p144 = por %p142, %p143
      %p145 = scmp.ne.s32.totalorder %s137, %s140
      %p146 = scmp.eq.s32.totalorder %s17, 0
      %p147 = por %p145, %p146
      %p148 = scmp.ne.s32.totalorder %s137, %s140
      %p149 = scmp.eq.s32.totalorder %s22, 1
      %p150 = por %p148, %p149
      %p151 = scmp.ne.s32.totalorder %s140, %s141
      %p152 = scmp.eq.s32.totalorder %s22, 0
      %p153 = por %p151, %p152
      %p154 = scmp.ne.s32.totalorder %s140, %s141
      %p155 = scmp.eq.s32.totalorder %s23, 1
      %p156 = por %p154, %p155
      %p158 = scmp.ne.s32.totalorder %s141, %s157
      %p159 = scmp.eq.s32.totalorder %s23, 0
      %p160 = por %p158, %p159
      %p161 = scmp.le.s32.totalorder 1, %s17
      %p162 = scmp.lt.s32.totalorder %s17, 3
      %p163 = pnand %p161, %p162
      %p164 = pneg %p163
      // Predicated region
      $region9: #{tpu_custom_call.1} parent=5 // pred_check
        _
      $region10: #{tpu_custom_call.1} parent=5 // pred_check_branch
        %166 = sbr.rel (%p163) target = $region12
      $region11: #{tpu_custom_call.1} parent=5 // pred_region
        %s167 = ssub.s32 %s17, 1
        // Predicated region
        $region13: #{tpu_custom_call.1} parent=11 // pred_check
          %p168 = pneg %p64
        $region14: #{tpu_custom_call.1} parent=11 // pred_check_branch
          %170 = sbr.rel (%p168) target = $region16
        $region15: #{tpu_custom_call.1} parent=11 // pred_region
          _
        $region16: #{tpu_custom_call.1} parent=11 // pred_fallthru
          _
        // Predicated region
        $region17: #{tpu_custom_call.1} parent=11 // pred_check
          %p171 = pneg %p85
        $region18: #{tpu_custom_call.1} parent=11 // pred_check_branch
          %173 = sbr.rel (%p171) target = $region20
        $region19: #{tpu_custom_call.1} parent=11 // pred_region
          _
        $region20: #{tpu_custom_call.1} parent=11 // pred_fallthru
          _
        // Predicated region
        $region21: #{tpu_custom_call.1} parent=11 // pred_check
          %p174 = pneg %p106
        $region22: #{tpu_custom_call.1} parent=11 // pred_check_branch
          %176 = sbr.rel (%p174) target = $region24
        $region23: #{tpu_custom_call.1} parent=11 // pred_region
          _
        $region24: #{tpu_custom_call.1} parent=11 // pred_fallthru
          _
        // Predicated region
        $region25: #{tpu_custom_call.1} parent=11 // pred_check
          %p177 = pneg %p127
        $region26: #{tpu_custom_call.1} parent=11 // pred_check_branch
          %179 = sbr.rel (%p177) target = $region28
        $region27: #{tpu_custom_call.1} parent=11 // pred_region
          _
        $region28: #{tpu_custom_call.1} parent=11 // pred_fallthru
          _
      $region12: #{tpu_custom_call.1} parent=5 // pred_fallthru
        _
      %p180 = scmp.lt.s32.totalorder %s17, 2
      // Predicated region
      $region29: #{tpu_custom_call.1} parent=5 // pred_check
        %p181 = pneg %p180
      $region30: #{tpu_custom_call.1} parent=5 // pred_check_branch
        %183 = sbr.rel (%p181) target = $region32
      $region31: #{tpu_custom_call.1} parent=5 // pred_region
        // Predicated region
        $region33: #{tpu_custom_call.1} parent=31 // pred_check
          %p184 = pneg %p37
        $region34: #{tpu_custom_call.1} parent=31 // pred_check_branch
          %186 = sbr.rel (%p184) target = $region36
        $region35: #{tpu_custom_call.1} parent=31 // pred_region
          %s187 = sand.u32 %s27, 1
          %s188 = scalar_lea.sflag [#allocation3], %s187
          %s189 = sand.u32 %s27, 1
          %s190 = smul.addr %s189, 64
          %s191 = scalar_lea.vmem [#allocation2], %s190
          %193 = vsyncadd %s188, 0
          %s194 = smul.addr %s17, 8
          %s195 = smul.addr %s194, 8
          %s196 = scalar_lea.hbm %s0, %s195
          %s197 = sshll.u32 %s196, 4
          %s198 = int_to_ptr.hbm [resolvable:$true] %s197
          %s199 = sshll.u32 %s191, 4
          %s200 = int_to_ptr.vmem [resolvable:$true] %s199
          %205 = dma.hbm_to_vmem [thread:$0]  %s198, 1024, %s200, %s188, 128, 128, 8
        $region36: #{tpu_custom_call.1} parent=31 // pred_fallthru
          _
      $region32: #{tpu_custom_call.1} parent=5 // pred_fallthru
        _
      %p206 = scmp.le.s32.totalorder 1, %s17
      %p207 = scmp.lt.s32.totalorder %s17, 3
      %p208 = pnand %p206, %p207
      %p209 = pneg %p208
      // Predicated region
      $region37: #{tpu_custom_call.1} parent=5 // pred_check
        _
      $region38: #{tpu_custom_call.1} parent=5 // pred_check_branch
        %211 = sbr.rel (%p208) target = $region40
      $region39: #{tpu_custom_call.1} parent=5 // pred_region
        %s212 = ssub.s32 %s17, 1
        %s213 = sand.u32 %s30, 1
        %s214 = scalar_lea.sflag [#allocation3], %s213
        %s215 = sand.u32 %s30, 1
        %s216 = smul.addr %s215, 64
        %s217 = scalar_lea.vmem [#allocation2], %s216
        // Predicated region
        $region41: #{tpu_custom_call.1} parent=39 // pred_check
          %p218 = pneg %p43
        $region42: #{tpu_custom_call.1} parent=39 // pred_check_branch
          %220 = sbr.rel (%p218) target = $region44
        $region43: #{tpu_custom_call.1} parent=39 // pred_region
          %222 = dma.done %s214, 1024
        $region44: #{tpu_custom_call.1} parent=39 // pred_fallthru
          _
        %s223 = sand.u32 %s30, 1
        %s224 = scalar_lea.sflag [#allocation3], %s223
        %s225 = sand.u32 %s30, 1
        %s226 = smul.addr %s225, 64
        %s227 = scalar_lea.vmem [#allocation2], %s226
        %p228 = pneg %p43
        %p229 = pneg %p40
        %p230 = pneg %p64
        %p231 = pneg %p61
        %p232 = pneg %p85
        %p233 = pneg %p82
        %p234 = pneg %p106
        %p235 = pneg %p103
        %p236 = pneg %p127
        %p237 = pneg %p124
        %p238 = pneg %p153
        %p239 = pneg %p150
        %s240 = sand.u32 %s140, 1
        %s241 = scalar_lea.sflag [#allocation4], %s240
        %s242 = sand.u32 %s140, 1
        %s243 = smul.addr %s242, 4
        %s244 = scalar_lea.vmem [#allocation5], %s243
        %v245 = vld [vmem:[%s217] sm:$0xff]
        %v246 = vld [vmem:[%s217 + $0x8] sm:$0xff]
        %v247 = vld [vmem:[%s217 + $0x10] sm:$0xff]
        %v248 = vld [vmem:[%s217 + $0x18] sm:$0xff]
        %v249 = vld [vmem:[%s217 + $0x20] sm:$0xff]
        %v250 = vld [vmem:[%s217 + $0x28] sm:$0xff]
        %v251 = vld [vmem:[%s217 + $0x30] sm:$0xff]
        %v252 = vld [vmem:[%s217 + $0x38] sm:$0xff]
        %v253 = vld [vmem:[%s2] sm:$0xff]
        %v254 = vld [vmem:[%s2 + $0x8] sm:$0xff]
        %vm255 = vcmask 130048
        %v257 = vsel %vm255, %v245, 0
        %v260 = vsel %vm255, %v246, 0
        %v263 = vsel %vm255, %v247, 0
        %v266 = vsel %vm255, %v248, 0
        %v269 = vsel %vm255, %v249, 0
        %v272 = vsel %vm255, %v250, 0
        %v275 = vsel %vm255, %v251, 0
        %v278 = vsel %vm255, %v252, 0
        %280 = vmatpush.msra.mxu0 0.0
        %281 = vmatpush.msra.mxu0 0.0
        %282 = vmatpush.msra.mxu0 0.0
        %283 = vmatpush.msra.mxu0 0.0
        %284 = vmatpush.msra.mxu0 0.0
        %285 = vmatpush.msra.mxu0 0.0
        %286 = vmatpush.msra.mxu0 0.0
        %287 = vmatpush.msra.mxu0 0.0
        %288 = vmatpush.msra.mxu0 0.0
        %289 = vmatpush.msra.mxu0 0.0
        %290 = vmatpush.msra.mxu0 0.0
        %291 = vmatpush.msra.mxu0 0.0
        %292 = vmatpush.msra.mxu0 0.0
        %293 = vmatpush.msra.mxu0 0.0
        %294 = vmatpush.msra.mxu0 %v254
        %295 = vmatpush.msra.mxu0 %v253
        %296 = vmatmul.f32.gmra.mxu0 %v257
        %v297 = vpop.f32.mrf.mxu0
        %v298 = vadd.f32 0.0, %v297
        %299 = vmatmul.f32.gmra.mxu0 %v260
        %v300 = vpop.f32.mrf.mxu0
        %v301 = vadd.f32 0.0, %v300
        %302 = vmatmul.f32.gmra.mxu0 %v263
        %v303 = vpop.f32.mrf.mxu0
        %v304 = vadd.f32 0.0, %v303
        %305 = vmatmul.f32.gmra.mxu0 %v266
        %v306 = vpop.f32.mrf.mxu0
        %v307 = vadd.f32 0.0, %v306
        %308 = vmatmul.f32.gmra.mxu0 %v269
        %v309 = vpop.f32.mrf.mxu0
        %v310 = vadd.f32 0.0, %v309
        %311 = vmatmul.f32.gmra.mxu0 %v272
        %v312 = vpop.f32.mrf.mxu0
        %v313 = vadd.f32 0.0, %v312
        %314 = vmatmul.f32.gmra.mxu0 %v275
        %v315 = vpop.f32.mrf.mxu0
        %v316 = vadd.f32 0.0, %v315
        %317 = vmatmul.f32.gmra.mxu0 %v278
        %v318 = vpop.f32.mrf.mxu0
        %v319 = vadd.f32 0.0, %v318
        %320 = vdwg.mxu0
        %v321 = vld [vmem:[%s1] sm:$0xff]
        %v323 = vsel %vm255, %v321, 0
        %325 = vmatpush.msra.mxu0 0.0
        %326 = vmatpush.msra.mxu0 0.0
        %327 = vmatpush.msra.mxu0 0.0
        %328 = vmatpush.msra.mxu0 0.0
        %329 = vmatpush.msra.mxu0 0.0
        %330 = vmatpush.msra.mxu0 0.0
        %331 = vmatpush.msra.mxu0 0.0
        %332 = vmatpush.msra.mxu0 0.0
        %333 = vmatpush.msra.mxu0 0.0
        %334 = vmatpush.msra.mxu0 0.0
        %335 = vmatpush.msra.mxu0 0.0
        %336 = vmatpush.msra.mxu0 0.0
        %337 = vmatpush.msra.mxu0 0.0
        %338 = vmatpush.msra.mxu0 0.0
        %339 = vmatpush.msra.mxu0 %v301
        %340 = vmatpush.msra.mxu0 %v298
        %341 = vmatmul.f32.gmra.mxu0 %v323
        %v342 = vpop.f32.mrf.mxu0
        %v343 = vadd.f32 0.0, %v342
        %344 = vdwg.mxu0
        %345 = vmatpush.msra.mxu0 0.0
        %346 = vmatpush.msra.mxu0 0.0
        %347 = vmatpush.msra.mxu0 0.0
        %348 = vmatpush.msra.mxu0 0.0
        %349 = vmatpush.msra.mxu0 0.0
        %350 = vmatpush.msra.mxu0 0.0
        %351 = vmatpush.msra.mxu0 0.0
        %352 = vmatpush.msra.mxu0 0.0
        %353 = vmatpush.msra.mxu0 0.0
        %354 = vmatpush.msra.mxu0 0.0
        %355 = vmatpush.msra.mxu0 0.0
        %356 = vmatpush.msra.mxu0 0.0
        %357 = vmatpush.msra.mxu0 0.0
        %358 = vmatpush.msra.mxu0 0.0
        %359 = vmatpush.msra.mxu0 %v307
        %360 = vmatpush.msra.mxu0 %v304
        %361 = vmatmul.f32.gmra.mxu0 %v323
        %v362 = vpop.f32.mrf.mxu0
        %v363 = vadd.f32 0.0, %v362
        %364 = vdwg.mxu0
        %365 = vmatpush.msra.mxu0 0.0
        %366 = vmatpush.msra.mxu0 0.0
        %367 = vmatpush.msra.mxu0 0.0
        %368 = vmatpush.msra.mxu0 0.0
        %369 = vmatpush.msra.mxu0 0.0
        %370 = vmatpush.msra.mxu0 0.0
        %371 = vmatpush.msra.mxu0 0.0
        %372 = vmatpush.msra.mxu0 0.0
        %373 = vmatpush.msra.mxu0 0.0
        %374 = vmatpush.msra.mxu0 0.0
        %375 = vmatpush.msra.mxu0 0.0
        %376 = vmatpush.msra.mxu0 0.0
        %377 = vmatpush.msra.mxu0 0.0
        %378 = vmatpush.msra.mxu0 0.0
        %379 = vmatpush.msra.mxu0 %v313
        %380 = vmatpush.msra.mxu0 %v310
        %381 = vmatmul.f32.gmra.mxu0 %v323
        %v382 = vpop.f32.mrf.mxu0
        %v383 = vadd.f32 0.0, %v382
        %384 = vdwg.mxu0
        %385 = vmatpush.msra.mxu0 0.0
        %386 = vmatpush.msra.mxu0 0.0
        %387 = vmatpush.msra.mxu0 0.0
        %388 = vmatpush.msra.mxu0 0.0
        %389 = vmatpush.msra.mxu0 0.0
        %390 = vmatpush.msra.mxu0 0.0
        %391 = vmatpush.msra.mxu0 0.0
        %392 = vmatpush.msra.mxu0 0.0
        %393 = vmatpush.msra.mxu0 0.0
        %394 = vmatpush.msra.mxu0 0.0
        %395 = vmatpush.msra.mxu0 0.0
        %396 = vmatpush.msra.mxu0 0.0
        %397 = vmatpush.msra.mxu0 0.0
        %398 = vmatpush.msra.mxu0 0.0
        %399 = vmatpush.msra.mxu0 %v319
        %400 = vmatpush.msra.mxu0 %v316
        %401 = vmatmul.f32.gmra.mxu0 %v323
        %v402 = vpop.f32.mrf.mxu0
        %v403 = vadd.f32 0.0, %v402
        %404 = vdwg.mxu0
        %v405 = vld [vmem:[%s3] sm:$0xf]
        %v406 = vrot.slane %v383, 4
        %vm407 = vcmask 1047556
        %v408 = vsel %vm407, %v406, %v343
        %v409 = vrot.slane %v343, 4
        %v410 = vsel %vm407, %v383, %v409
        %v412 = vunpack.c.l.s4 1983009808
        %v413 = vunpack.c.0.s8 %v412
        %v414 = vperm.slane %v408, %v413
        %v416 = vunpack.c.l.s4 1983009808
        %v417 = vunpack.c.0.s8 %v416
        %v418 = vperm.slane %v410, %v417
        %v419 = vrot.slane %v403, 4
        %v420 = vsel %vm407, %v419, %v363
        %v421 = vrot.slane %v363, 4
        %v422 = vsel %vm407, %v403, %v421
        %v424 = vunpack.c.l.s4 1983009808
        %v425 = vunpack.c.0.s8 %v424
        %v426 = vperm.slane %v420, %v425
        %v428 = vunpack.c.l.s4 1983009808
        %v429 = vunpack.c.0.s8 %v428
        %v430 = vperm.slane %v422, %v429
        %v431 = vrot.slane %v426, 4
        %v432 = vsel %vm407, %v431, %v414
        %v433 = vrot.slane %v414, 4
        %v434 = vsel %vm407, %v426, %v433
        %v436 = vunpack.c.l.s4 1934713408
        %v437 = vunpack.c.0.s8 %v436
        %v438 = vperm.slane %v432, %v437
        %v440 = vunpack.c.l.s4 1934713408
        %v441 = vunpack.c.0.s8 %v440
        %v442 = vperm.slane %v434, %v441
        %v443 = vrot.slane %v430, 4
        %v444 = vsel %vm407, %v443, %v418
        %v445 = vrot.slane %v418, 4
        %v446 = vsel %vm407, %v430, %v445
        %v448 = vunpack.c.l.s4 1934713408
        %v449 = vunpack.c.0.s8 %v448
        %v450 = vperm.slane %v444, %v449
        %v452 = vunpack.c.l.s4 1934713408
        %v453 = vunpack.c.0.s8 %v452
        %v454 = vperm.slane %v446, %v453
        %v455 = vrot.slane %v438, 4
        %v456 = vsel %vm407, 0.0, %v455
        %v457 = vrot.slane %v442, 4
        %v458 = vsel %vm407, 0.0, %v457
        %v459 = vrot.slane %v450, 4
        %v460 = vsel %vm407, 0.0, %v459
        %v461 = vrot.slane %v454, 4
        %v462 = vsel %vm407, 0.0, %v461
        %464 = vrot.lane.b32.xlu0 %v456, 8
        %v465 = vpop.permute.xlu0 %464
        %468 = vrot.lane.b32.xlu0 %v442, 16
        %v469 = vpop.permute.xlu0 %468
        %472 = vrot.lane.b32.xlu0 %v458, 24
        %v473 = vpop.permute.xlu0 %472
        %476 = vrot.lane.b32.xlu0 %v450, 32
        %v477 = vpop.permute.xlu0 %476
        %480 = vrot.lane.b32.xlu0 %v460, 40
        %v481 = vpop.permute.xlu0 %480
        %484 = vrot.lane.b32.xlu0 %v454, 48
        %v485 = vpop.permute.xlu0 %484
        %488 = vrot.lane.b32.xlu0 %v462, 56
        %v489 = vpop.permute.xlu0 %488
        %vm491 = vcmask 64512
        %v492 = vsel %vm491, %v438, %v465
        %v493 = vsel %vm255, %v492, %v469
        %vm494 = vcmask 195584
        %v495 = vsel %vm494, %v493, %v473
        %vm496 = vcmask 261120
        %v497 = vsel %vm496, %v495, %v477
        %vm498 = vcmask 326656
        %v499 = vsel %vm498, %v497, %v481
        %vm500 = vcmask 392192
        %v501 = vsel %vm500, %v499, %v485
        %vm502 = vcmask 457728
        %v503 = vsel %vm502, %v501, %v489
        %v504 = vld [vmem:[%s4] sm:$0xf]
        %506 = vset.pattern.permute.xlu0 0
        %507 = vperm.xlu0 %506, %v504
        %v508 = vpop.permute.xlu0 %507
        %vm510 = vcmask 31744
        %v512 = vsel %vm510, %v405, 0
        %vm514 = vcmask 1043456
        %v516 = vsel %vm514, %v503, 0
        %518 = vmatpush.msra.mxu0 0.0
        %519 = vmatpush.msra.mxu0 0.0
        %520 = vmatpush.msra.mxu0 0.0
        %521 = vmatpush.msra.mxu0 0.0
        %522 = vmatpush.msra.mxu0 0.0
        %523 = vmatpush.msra.mxu0 0.0
        %524 = vmatpush.msra.mxu0 0.0
        %525 = vmatpush.msra.mxu0 0.0
        %526 = vmatpush.msra.mxu0 0.0
        %527 = vmatpush.msra.mxu0 0.0
        %528 = vmatpush.msra.mxu0 0.0
        %529 = vmatpush.msra.mxu0 0.0
        %530 = vmatpush.msra.mxu0 0.0
        %531 = vmatpush.msra.mxu0 0.0
        %532 = vmatpush.msra.mxu0 0.0
        %533 = vmatpush.msra.mxu0 %v516
        %534 = vmatmul.f32.gmra.mxu0 %v512
        %v535 = vpop.f32.mrf.mxu0
        %v536 = vadd.f32 %v508, %v535
        %537 = vdwg.mxu0
        %vm538 = vcmask 519168
        %539 = vst.msk [vmem:[%s244] sm:$0xf] %vm538, %v536
        %s540 = sand.u32 %s140, 1
        %s541 = scalar_lea.sflag [#allocation4], %s540
        %s542 = sand.u32 %s140, 1
        %s543 = smul.addr %s542, 4
        %s544 = scalar_lea.vmem [#allocation5], %s543
        // Predicated region
        $region45: #{tpu_custom_call.1} parent=39 // pred_check
          %p545 = pneg %p150
        $region46: #{tpu_custom_call.1} parent=39 // pred_check_branch
          %547 = sbr.rel (%p545) target = $region48
        $region47: #{tpu_custom_call.1} parent=39 // pred_region
          %549 = vsyncadd %s541, 0
          %s550 = smul.addr %s22, 4
          %s551 = scalar_lea.hbm %s5, %s550
          %s553 = sshll.u32 %s544, 4
          %s554 = int_to_ptr.vmem [resolvable:$true] %s553
          %s555 = sshll.u32 %s551, 4
          %s556 = int_to_ptr.hbm [resolvable:$true] %s555
          %558 = dma.vmem_to_hbm [thread:$0]  %s554, 64, %s556, %s541
        $region48: #{tpu_custom_call.1} parent=39 // pred_fallthru
          _
      $region40: #{tpu_custom_call.1} parent=5 // pred_fallthru
        _
      %p559 = scmp.le.s32.totalorder 2, %s17
      // Predicated region
      $region49: #{tpu_custom_call.1} parent=5 // pred_check
        %p560 = pneg %p559
      $region50: #{tpu_custom_call.1} parent=5 // pred_check_branch
        %562 = sbr.rel (%p560) target = $region52
      $region51: #{tpu_custom_call.1} parent=5 // pred_region
        %s563 = ssub.s32 %s17, 2
        // Predicated region
        $region53: #{tpu_custom_call.1} parent=51 // pred_check
          %p564 = pneg %p156
        $region54: #{tpu_custom_call.1} parent=51 // pred_check_branch
          %566 = sbr.rel (%p564) target = $region56
        $region55: #{tpu_custom_call.1} parent=51 // pred_region
          %s567 = sand.u32 %s141, 1
          %s568 = scalar_lea.sflag [#allocation4], %s567
          %s569 = sand.u32 %s141, 1
          %s570 = smul.addr %s569, 4
          %s571 = scalar_lea.vmem [#allocation5], %s570
          %573 = dma.done %s568, 64
        $region56: #{tpu_custom_call.1} parent=51 // pred_fallthru
          _
      $region52: #{tpu_custom_call.1} parent=5 // pred_fallthru
        _
    $region6: #{tpu_custom_call.1} parent=1 // loop_footer
      %s21 = sadd.s32 1, %s17
    $region7: #{tpu_custom_call.1} parent=1 // loop_footer_branch
      %16 = sbr.rel target = $region3
    $region8: #{tpu_custom_call.1} parent=1 // loop_exit
      _
    %574 = vsyncpa [#allocation3], 1
    %s575 = scalar_lea.sflag [#allocation3], 1
    %576 = vsyncpa %s575, 1
    %577 = vsyncpa [#allocation4], 1
    %s578 = scalar_lea.sflag [#allocation4], 1
    %579 = vsyncpa %s578, 1

</llo_original>
